<compile_context>
chip_gen: v7x
topology: tpu7x:2x2x1
jax: 0.10.0
libtpu: 0.0.40
codegen_flags: <defaults>
</compile_context>

<pallas_src>
import functools

import jax
import jax.numpy as jnp
from jax.experimental import pallas as pl
from jax.experimental.pallas import tpu as pltpu


def _depth_gate_kernel(g_ref, a_ref, b_ref, o_ref, *, compute_f32):
    # g_ref : VMEM f32 (tile_r, 1)      -- per-row gate, lane-broadcasts on VPU
    # a_ref : VMEM (tile_r, tile_f)     -- input_hidden_states rows
    # b_ref : VMEM (tile_r, tile_f)     -- output_tensor rows
    a = a_ref[...]
    b = b_ref[...]
    g = g_ref[...]  # (tile_r, 1) float32
    if compute_f32:
        a32 = a.astype(jnp.float32)
        o = a32 + g * (b.astype(jnp.float32) - a32)
    else:
        # bf16-native path (v6e / v7x): no full-tile upcast, only the tiny gate
        # column is downcast.
        o = a + g.astype(a.dtype) * (b - a)
    o_ref[...] = o.astype(o_ref.dtype)


def _cdiv(a, b):
    return -(-a // b)


def _vmem_capacity_bytes():
    try:
        return int(pltpu.get_tpu_info().vmem_capacity_bytes)
    except Exception:
        return 64 << 20  # conservative: assume the smallest (v7x per-TC)


def _is_v5_device():
    try:
        return "v5" in jax.devices()[0].device_kind.lower()
    except Exception:
        return False


def _pick_tiles(rows, feat, itemsize, block_budget):
    """Pick (tile_r, tile_f).

    tile_f is a multiple of 128 (or == feat when feat isn't 128-aligned);
    tile_r is a multiple of the dtype's sublane pack (or == rows).  Each
    (tile_r, tile_f) block targets <= block_budget bytes per array.
    """
    sub = max(8, 32 // max(1, itemsize))  # 8 f32, 16 bf16, 32 int8/fp8

    # Typical DepthGate: rows = B*width is tens -> take them all.
    tile_r = rows if rows <= 1024 else 1024  # 1024 is a multiple of any `sub`

    if feat % 128 != 0:
        # (8,128) rule: a non-128-multiple block must be the full extent.
        # TODO(synk): for huge non-128-aligned feat, a smarter (C, H*W) split
        # would keep blocks small; fall back to shrinking tile_r instead.
        tile_f = feat
    else:
        max_lanes = block_budget // max(1, tile_r * itemsize)
        tile_f = min(feat, max(128, (max_lanes // 128) * 128))

    # If the block still exceeds the budget (tile_f pinned at feat or 128),
    # shrink the row tile instead.
    if tile_r * tile_f * itemsize > block_budget:
        max_rows = block_budget // max(1, tile_f * itemsize)
        tile_r = max(sub, (max_rows // sub) * sub)
        tile_r = min(tile_r, rows)

    # Give the software pipeline / v7x's second TensorCore work: a big problem
    # that would land in <8 blocks gets its feat axis split finer.
    if feat % 128 == 0 and rows * feat * itemsize >= (8 << 20):
        while _cdiv(rows, tile_r) * _cdiv(feat, tile_f) < 8 and tile_f > 512:
            tile_f = max(512, ((tile_f // 2) // 128) * 128)

    return tile_r, tile_f


def depth_gate_pallas(gate, input_hidden_states, output_tensor, *, donate_input=False):
    """DepthGate.forward.

    gate: (B0, width); tensors: (B, width, C, H, W) with B % B0 == 0.
    out = (1 - gate[..., None, None, None]) * input_hidden_states
          +      gate[..., None, None, None]  * output_tensor
    """
    B, width, C, H, W = input_hidden_states.shape
    assert output_tensor.shape == input_hidden_states.shape
    B0, w0 = gate.shape
    assert w0 == width and B % B0 == 0
    if B0 != B:
        # mirrors mask.repeat(B // B0, 1, 1, 1); the gate is tiny.
        gate = jnp.tile(gate, (B // B0, 1))

    feat = C * H * W
    rows = B * width
    dtype = input_hidden_states.dtype
    itemsize = jnp.dtype(dtype).itemsize

    a = input_hidden_states.reshape(rows, feat)
    b = output_tensor.reshape(rows, feat)
    g = gate.reshape(rows, 1).astype(jnp.float32)

    # Per-generation block / scoped-VMEM budgets.
    cap = _vmem_capacity_bytes()
    if cap <= (64 << 20):          # v7x: 64 MiB VMEM per TensorCore
        block_budget, vmem_limit = 3 << 20, 40 << 20
    else:                          # v5e / v6e: 128 MiB VMEM
        block_budget, vmem_limit = 6 << 20, 80 << 20

    tile_r, tile_f = _pick_tiles(rows, feat, itemsize, block_budget)
    block_bytes = tile_r * tile_f * itemsize
    # Double-buffered a/b/out blocks + gate column + slack must fit the limit.
    needed = 6 * block_bytes + 4 * tile_r * 4 + (2 << 20)
    vmem_limit = int(min(max(vmem_limit, needed), cap))

    grid = (_cdiv(rows, tile_r), _cdiv(feat, tile_f))

    # v5e's VPU has no bf16: keep the f32 upcast there (and trivially for f32).
    compute_f32 = (dtype == jnp.float32) or _is_v5_device()

    cost = pl.CostEstimate(
        flops=3 * rows * feat,
        transcendentals=0,
        bytes_accessed=3 * rows * feat * itemsize + rows * 4,
    )

    kernel = functools.partial(_depth_gate_kernel, compute_f32=compute_f32)

    out = pl.pallas_call(
        kernel,
        out_shape=jax.ShapeDtypeStruct((rows, feat), dtype),
        grid=grid,
        in_specs=[
            pl.BlockSpec((tile_r, 1), lambda i, j: (i, 0)),       # gate column
            pl.BlockSpec((tile_r, tile_f), lambda i, j: (i, j)),  # input_hidden
            pl.BlockSpec((tile_r, tile_f), lambda i, j: (i, j)),  # output_tensor
        ],
        out_specs=pl.BlockSpec((tile_r, tile_f), lambda i, j: (i, j)),
        compiler_params=pltpu.CompilerParams(
            dimension_semantics=("parallel", "parallel"),
            vmem_limit_bytes=vmem_limit,
        ),
        cost_estimate=cost,
        # Only valid when the caller can donate input_hidden_states.
        input_output_aliases={1: 0} if donate_input else {},
    )(g, a, b)
    return out.reshape(B, width, C, H, W)


if __name__ == "__main__":
    key = jax.random.PRNGKey(0)
    k1, k2, k3 = jax.random.split(key, 3)

    # Small shapes consistent with the module's NCHW-per-depth-slot layout.
    B, width, C, H, W = 2, 4, 4, 16, 16
    input_hidden_states = jax.random.normal(k1, (B, width, C, H, W), jnp.float32)
    output_tensor = jax.random.normal(k2, (B, width, C, H, W), jnp.float32)

    # __init__ sets gate_f = torch.ones(1, width); exercise a non-trivial gate
    # via the set_structure_value pathway with B0=1 != B=2 so the batch-repeat
    # branch is covered too.
    gate = jax.random.uniform(k3, (1, width), dtype=jnp.float32)

    # f32 path
    out = depth_gate_pallas(gate, input_hidden_states, output_tensor)
    out = jax.block_until_ready(out)

    mask = jnp.tile(gate, (B // gate.shape[0], 1))[:, :, None, None, None]
    ref = (1.0 - mask) * input_hidden_states + mask * output_tensor
    assert out.shape == ref.shape
    assert jnp.allclose(out, ref, atol=1e-6, rtol=1e-6), "f32 mismatch vs reference"

    # bf16 path (bf16 compute on v6e/v7x, f32 compute on v5e) -- looser tol.
    a16 = input_hidden_states.astype(jnp.bfloat16)
    b16 = output_tensor.astype(jnp.bfloat16)
    out16 = jax.block_until_ready(depth_gate_pallas(gate, a16, b16))
    ref16 = (1.0 - mask) * a16.astype(jnp.float32) + mask * b16.astype(jnp.float32)
    assert out16.dtype == jnp.bfloat16
    assert jnp.allclose(out16.astype(jnp.float32), ref16, atol=5e-2, rtol=5e-2), \
        "bf16 mismatch vs reference"

    print("KERNEL_OK")
</pallas_src>

<mosaic_0001>
module attributes {stable_mosaic.version = 11 : i64} {
  func.func @_depth_gate_kernel(%arg0: i32, %arg1: i32, %arg2: memref<8x1xf32, #tpu.memory_space<vmem>>, %arg3: memref<8x1024xf32, #tpu.memory_space<vmem>>, %arg4: memref<8x1024xf32, #tpu.memory_space<vmem>>, %arg5: memref<8x1024xf32, #tpu.memory_space<vmem>>) attributes {dimension_semantics = [#tpu.dimension_semantics<parallel>, #tpu.dimension_semantics<parallel>], iteration_bounds = array<i64: 1, 1>, scalar_prefetch = 0 : i64, scratch_operands = 0 : i64, tpu.core_type = #tpu.core_type<tc>, window_params = [{transform_indices = @transform_0, window_bounds = array<i64: 8, 1>}, {transform_indices = @transform_1, window_bounds = array<i64: 8, 1024>}, {transform_indices = @transform_2, window_bounds = array<i64: 8, 1024>}, {transform_indices = @transform_3, window_bounds = array<i64: 8, 1024>}]} {
    %c0 = arith.constant 0 : index
    %c0_0 = arith.constant 0 : index
    %0 = vector.load %arg3[%c0, %c0_0] : memref<8x1024xf32, #tpu.memory_space<vmem>>, vector<8x1024xf32>
    %c0_1 = arith.constant 0 : index
    %c0_2 = arith.constant 0 : index
    %1 = vector.load %arg4[%c0_1, %c0_2] : memref<8x1024xf32, #tpu.memory_space<vmem>>, vector<8x1024xf32>
    %c0_3 = arith.constant 0 : index
    %c0_4 = arith.constant 0 : index
    %2 = vector.load %arg2[%c0_3, %c0_4] : memref<8x1xf32, #tpu.memory_space<vmem>>, vector<8x1xf32>
    %3 = arith.subf %1, %0 : vector<8x1024xf32>
    %4 = vector.broadcast %2 : vector<8x1xf32> to vector<8x1024xf32>
    %5 = arith.mulf %4, %3 : vector<8x1024xf32>
    %6 = arith.addf %0, %5 : vector<8x1024xf32>
    %c0_5 = arith.constant 0 : index
    %c0_6 = arith.constant 0 : index
    %7 = vector.load %arg5[%c0_5, %c0_6] : memref<8x1024xf32, #tpu.memory_space<vmem>>, vector<8x1024xf32>
    tpu.vector_store %arg5[%c0_5, %c0_6], %6 {strides = array<i32>} : memref<8x1024xf32, #tpu.memory_space<vmem>>, vector<8x1024xf32>,
    return
  }
  func.func @transform_0(%arg0: i32, %arg1: i32) -> (i32, i32) {
    %c0_i32 = arith.constant 0 : i32
    %c0_i32_0 = arith.constant 0 : i32
    return %arg0, %c0_i32 : i32, i32
  }
  func.func @transform_1(%arg0: i32, %arg1: i32) -> (i32, i32) {
    %c0_i32 = arith.constant 0 : i32
    return %arg0, %arg1 : i32, i32
  }
  func.func @transform_2(%arg0: i32, %arg1: i32) -> (i32, i32) {
    %c0_i32 = arith.constant 0 : i32
    return %arg0, %arg1 : i32, i32
  }
  func.func @transform_3(%arg0: i32, %arg1: i32) -> (i32, i32) {
    %c0_i32 = arith.constant 0 : i32
    return %arg0, %arg1 : i32, i32
  }
}

</mosaic_0001>

<llo_original>
// kernel: tpu_custom_call.1
$region0: #{tpu_custom_call.1}
  #allocation0 [shape = 'u32[]', space=smem, size = 0x4, offset = 0x4, fixed_abs, tag = 'smem constant byte address 0x4 - core index']
  #allocation1 [shape = 'u32[144,128]{1,0:T(1,128)}', space=vmem, size = 0x12000, scoped, tag = 'internal scratch']
  %s0 = inlined_call_operand.vmem [shape: f32[8,1], index: 0, kind: input, shape index: {}]
  %s1 = inlined_call_operand.hbm [shape: f32[8,1024], index: 1, kind: input, shape index: {}]
  %s2 = inlined_call_operand.hbm [shape: f32[8,1024], index: 2, kind: input, shape index: {}]
  %s3 = inlined_call_operand.hbm [shape: f32[8,1024], index: 3, kind: output, shape index: {}]
  %s4 = sld [smem:[#allocation0]]
  $region30: #{tpu_custom_call.1} parent=0
    _
  %s6 = ssub.s32 1, %s4
  %s7 = scalar_select 0, %s6, %s4
  $region1: #{tpu_custom_call.1} parent=0
    #allocation2 [shape = 'u8[32768]{0}', space=vmem, size = 0x8000, scoped, tag = 'input window, operand 1, single buffered']
    #allocation3 [shape = 's32[1]{0}', space=sflag, size = 0x4, scoped, tag = 'scoped memory for tpu_custom_call.1']
    #allocation4 [shape = 's32[1]{0}', space=sflag, size = 0x4, scoped, tag = 'scoped memory for tpu_custom_call.1']
    #allocation5 [shape = 'u8[32768]{0}', space=vmem, size = 0x8000, scoped, tag = 'input window, operand 2, single buffered']
    #allocation6 [shape = 's32[1]{0}', space=sflag, size = 0x4, scoped, tag = 'scoped memory for tpu_custom_call.1']
    #allocation7 [shape = 'u8[32768]{0}', space=vmem, size = 0x8000, scoped, tag = 'output window, operand 0, single buffered']
    %8 = vsyncpa [#allocation3], 0
    %9 = vsyncpa [#allocation6], 0
    %10 = vsyncpa [#allocation4], 0
    // Predicated region
    $region2: #{tpu_custom_call.1} parent=1 // pred_check
      _
    $region3: #{tpu_custom_call.1} parent=1 // pred_check_branch
      %12 = sbr.rel (0) target = $region5
    $region4: #{tpu_custom_call.1} parent=1 // pred_region
      _
    $region5: #{tpu_custom_call.1} parent=1 // pred_fallthru
      _
    // Predicated region
    $region6: #{tpu_custom_call.1} parent=1 // pred_check
      _
    $region7: #{tpu_custom_call.1} parent=1 // pred_check_branch
      %14 = sbr.rel (0) target = $region9
    $region8: #{tpu_custom_call.1} parent=1 // pred_region
      %s16 = ssub.s32 1024, 1024
      %17 = vsyncadd [#allocation3], %s16
      %s19 = sshll.u32 [#allocation2], 4
      %s20 = int_to_ptr.vmem [resolvable:$true] %s19
      %22 = dma.hbm_to_vmem [thread:$0]  %s1, 1024, %s20, [#allocation3]
    $region9: #{tpu_custom_call.1} parent=1 // pred_fallthru
      _
    // Predicated region
    $region10: #{tpu_custom_call.1} parent=1 // pred_check
      _
    $region11: #{tpu_custom_call.1} parent=1 // pred_check_branch
      %24 = sbr.rel (0) target = $region13
    $region12: #{tpu_custom_call.1} parent=1 // pred_region
      %s26 = ssub.s32 1024, 1024
      %27 = vsyncadd [#allocation6], %s26
      %s29 = sshll.u32 [#allocation5], 4
      %s30 = int_to_ptr.vmem [resolvable:$true] %s29
      %32 = dma.hbm_to_vmem [thread:$0]  %s2, 1024, %s30, [#allocation6]
    $region13: #{tpu_custom_call.1} parent=1 // pred_fallthru
      _
    // Predicated region
    $region14: #{tpu_custom_call.1} parent=1 // pred_check
      _
    $region15: #{tpu_custom_call.1} parent=1 // pred_check_branch
      %34 = sbr.rel (0) target = $region17
    $region16: #{tpu_custom_call.1} parent=1 // pred_region
      %35 = dma.done [#allocation3], 1024
    $region17: #{tpu_custom_call.1} parent=1 // pred_fallthru
      _
    // Predicated region
    $region18: #{tpu_custom_call.1} parent=1 // pred_check
      _
    $region19: #{tpu_custom_call.1} parent=1 // pred_check_branch
      %37 = sbr.rel (0) target = $region21
    $region20: #{tpu_custom_call.1} parent=1 // pred_region
      %38 = dma.done [#allocation6], 1024
    $region21: #{tpu_custom_call.1} parent=1 // pred_fallthru
      _
    %v39 = vld [vmem:[#allocation2] sm:$0xff]
    %v40 = vld [vmem:[#allocation2 + $0x8] sm:$0xff]
    %v41 = vld [vmem:[#allocation2 + $0x10] sm:$0xff]
    %v42 = vld [vmem:[#allocation2 + $0x18] sm:$0xff]
    %v43 = vld [vmem:[#allocation2 + $0x20] sm:$0xff]
    %v44 = vld [vmem:[#allocation2 + $0x28] sm:$0xff]
    %v45 = vld [vmem:[#allocation2 + $0x30] sm:$0xff]
    %v46 = vld [vmem:[#allocation2 + $0x38] sm:$0xff]
    %v47 = vld [vmem:[#allocation5] sm:$0xff]
    %v48 = vld [vmem:[#allocation5 + $0x8] sm:$0xff]
    %v49 = vld [vmem:[#allocation5 + $0x10] sm:$0xff]
    %v50 = vld [vmem:[#allocation5 + $0x18] sm:$0xff]
    %v51 = vld [vmem:[#allocation5 + $0x20] sm:$0xff]
    %v52 = vld [vmem:[#allocation5 + $0x28] sm:$0xff]
    %v53 = vld [vmem:[#allocation5 + $0x30] sm:$0xff]
    %v54 = vld [vmem:[#allocation5 + $0x38] sm:$0xff]
    %v55 = vld [vmem:[%s0] sm:$0xff]
    %v56 = vsub.f32 %v47, %v39
    %v57 = vsub.f32 %v48, %v40
    %v58 = vsub.f32 %v49, %v41
    %v59 = vsub.f32 %v50, %v42
    %v60 = vsub.f32 %v51, %v43
    %v61 = vsub.f32 %v52, %v44
    %v62 = vsub.f32 %v53, %v45
    %v63 = vsub.f32 %v54, %v46
    %65 = vset.pattern.permute.xlu0 0
    %66 = vperm.xlu0 %65, %v55
    %v67 = vpop.permute.xlu0 %66
    %v69 = vmul.f32 %v67, %v56
    %v70 = vmul.f32 %v67, %v57
    %v71 = vmul.f32 %v67, %v58
    %v72 = vmul.f32 %v67, %v59
    %v73 = vmul.f32 %v67, %v60
    %v74 = vmul.f32 %v67, %v61
    %v75 = vmul.f32 %v67, %v62
    %v76 = vmul.f32 %v67, %v63
    %v77 = vadd.f32 %v39, %v69
    %v78 = vadd.f32 %v40, %v70
    %v79 = vadd.f32 %v41, %v71
    %v80 = vadd.f32 %v42, %v72
    %v81 = vadd.f32 %v43, %v73
    %v82 = vadd.f32 %v44, %v74
    %v83 = vadd.f32 %v45, %v75
    %v84 = vadd.f32 %v46, %v76
    %85 = vst [vmem:[#allocation7] sm:$0xff] %v77
    %86 = vst [vmem:[#allocation7 + $0x8] sm:$0xff] %v78
    %87 = vst [vmem:[#allocation7 + $0x10] sm:$0xff] %v79
    %88 = vst [vmem:[#allocation7 + $0x18] sm:$0xff] %v80
    %89 = vst [vmem:[#allocation7 + $0x20] sm:$0xff] %v81
    %90 = vst [vmem:[#allocation7 + $0x28] sm:$0xff] %v82
    %91 = vst [vmem:[#allocation7 + $0x30] sm:$0xff] %v83
    %92 = vst [vmem:[#allocation7 + $0x38] sm:$0xff] %v84
    // Predicated region
    $region22: #{tpu_custom_call.1} parent=1 // pred_check
      _
    $region23: #{tpu_custom_call.1} parent=1 // pred_check_branch
      %94 = sbr.rel (0) target = $region25
    $region24: #{tpu_custom_call.1} parent=1 // pred_region
      %s96 = ssub.s32 1024, 1024
      %97 = vsyncadd [#allocation4], %s96
      %s99 = sshll.u32 [#allocation7], 4
      %s100 = int_to_ptr.vmem [resolvable:$true] %s99
      %102 = dma.vmem_to_hbm [thread:$0]  %s100, 1024, %s3, [#allocation4]
    $region25: #{tpu_custom_call.1} parent=1 // pred_fallthru
      _
    // Predicated region
    $region26: #{tpu_custom_call.1} parent=1 // pred_check
      _
    $region27: #{tpu_custom_call.1} parent=1 // pred_check_branch
      %104 = sbr.rel (0) target = $region29
    $region28: #{tpu_custom_call.1} parent=1 // pred_region
      %105 = dma.done [#allocation4], 1024
    $region29: #{tpu_custom_call.1} parent=1 // pred_fallthru
      _
    %106 = vsyncpa [#allocation3], 1
    %107 = vsyncpa [#allocation6], 1
    %108 = vsyncpa [#allocation4], 1

</llo_original>
